<compile_context>
chip_gen: v7x
topology: tpu7x:2x2x1
jax: 0.10.0
libtpu: 0.0.40
codegen_flags: <defaults>
</compile_context>

<pallas_src>
import functools

import jax
import jax.numpy as jnp
import numpy as np
from jax.experimental import pallas as pl
from jax.experimental.pallas import tpu as pltpu


# ---------------------------------------------------------------------------
# Pallas kernels
# ---------------------------------------------------------------------------
def _scalar_mode_kernel(t_ref, o_ref, *, mode, label):
    """kernel_size / stride -> single scalar; pure SMEM / scalar-unit path."""
    val = t_ref[label]                          # scalar sld from SMEM
    if mode == "kernel_size":
        val = (val - 1.0) * 0.5
        # `targets = targets - 1 if targets == 3 else targets`
        val = jnp.where(val == 3.0, val - 1.0, val)
    else:                                       # stride
        val = val - 1.0
    o_ref[0] = val                              # scalar sst to SMEM output


def _outch_cls_kernel(t_ref, o_ref, *, label):
    """out_channels (non-regression) -> log2(t[label]) - 6.

    log2 has no scalar lowering on TPU (EUP is vector-only), so the scalar is
    broadcast to a 1x1 tile, transformed on the EUP and stored to VMEM.
    """
    val = t_ref[label]                          # scalar from SMEM
    v = jnp.full((1, 1), val, jnp.float32)      # scalar -> vreg broadcast
    o_ref[...] = jnp.log2(v) - 6.0


def _outch_reg_conv2d_kernel(t_ref, o_ref):
    """out_channels + regression + conv2d -> [t0, t1, t2, t8, log2(O_c)]."""
    t0 = t_ref[0]
    t1 = t_ref[1]
    t2 = t_ref[2]
    t8 = t_ref[8]
    o_c = t0 * t2 * t2 * t1 * t8 * t8           # scalar-unit product
    # log2 must run on the EUP (vector).  The copied elements ride along in
    # the same (1, 5) vreg via a short select chain — the result has to be a
    # vector store anyway, so this adds no extra lane traffic.
    log_oc = jnp.log2(jnp.full((1, 5), o_c, jnp.float32))
    idx = jax.lax.broadcasted_iota(jnp.int32, (1, 5), 1)
    out = jnp.where(idx == 0, t0,
          jnp.where(idx == 1, t1,
          jnp.where(idx == 2, t2,
          jnp.where(idx == 3, t8, log_oc))))
    o_ref[...] = out.astype(o_ref.dtype)


def _outch_reg_linear_kernel(t_ref, o_ref):
    """out_channels + regression + linear -> [t0, t1, log2(O_l)]."""
    t0 = t_ref[0]
    t1 = t_ref[1]
    o_l = t0 * t1
    log_ol = jnp.log2(jnp.full((1, 3), o_l, jnp.float32))
    idx = jax.lax.broadcasted_iota(jnp.int32, (1, 3), 1)
    out = jnp.where(idx == 0, t0, jnp.where(idx == 1, t1, log_ol))
    o_ref[...] = out.astype(o_ref.dtype)


# ---------------------------------------------------------------------------
# Gridless pallas_call wrappers (single invocation, SMEM input)
# ---------------------------------------------------------------------------
_SMEM = pltpu.MemorySpace.SMEM
_VMEM = pltpu.MemorySpace.VMEM


def _run_smem_out(kernel, targets_1d):
    return pl.pallas_call(
        kernel,
        out_shape=jax.ShapeDtypeStruct((1,), jnp.float32),
        in_specs=[pl.BlockSpec(memory_space=_SMEM)],
        out_specs=pl.BlockSpec(memory_space=_SMEM),
    )(targets_1d)


def _run_vmem_out(kernel, targets_1d, out_n):
    return pl.pallas_call(
        kernel,
        out_shape=jax.ShapeDtypeStruct((1, out_n), jnp.float32),
        in_specs=[pl.BlockSpec(memory_space=_SMEM)],
        out_specs=pl.BlockSpec(memory_space=_VMEM),
    )(targets_1d)


# ---------------------------------------------------------------------------
# Module-equivalent wrapper (no parameters, only config)
# ---------------------------------------------------------------------------
class ToTargets:
    def __init__(self, mode, label, layer_type, regression=False):
        self.mode = mode
        self.label = label
        self.layer_type = layer_type
        self.is_regression = regression

    def __call__(self, targets):
        t = jnp.asarray(targets, jnp.float32).reshape(-1)   # 1-D, SMEM-friendly
        n = t.shape[0]

        if self.mode == "out_channels":
            if self.is_regression:
                if self.layer_type == "conv2d":
                    if n < 9:                    # trace-time bounds check (no silent OOB)
                        raise ValueError("conv2d regression targets need >= 9 entries")
                    return _run_vmem_out(_outch_reg_conv2d_kernel, t, 5)[0]
                if self.layer_type == "linear":
                    if n < 2:
                        raise ValueError("linear regression targets need >= 2 entries")
                    return _run_vmem_out(_outch_reg_linear_kernel, t, 3)[0]
                return t                         # pass-through (mirrors PyTorch)
            kern = functools.partial(_outch_cls_kernel, label=self.label)
            return _run_vmem_out(kern, t, 1)[0, 0]

        if self.mode in ("kernel_size", "stride"):
            kern = functools.partial(
                _scalar_mode_kernel, mode=self.mode, label=self.label)
            return _run_smem_out(kern, t)[0]

        return t                                 # unknown mode: identity, like PyTorch


# ---------------------------------------------------------------------------
# Pure-numpy reference (correctness check)
# ---------------------------------------------------------------------------
def _ref(mode, label, layer_type, regression, targets):
    targets = np.asarray(targets, np.float32)
    if mode == "kernel_size":
        v = (targets[label] - 1) / 2
        return np.float32(v - 1 if v == 3 else v)
    if mode == "stride":
        return np.float32(targets[label] - 1)
    if mode == "out_channels":
        if regression:
            if layer_type == "conv2d":
                o_c = targets[0] * targets[2] ** 2 * targets[1] * targets[8] ** 2
                return np.concatenate(
                    [targets[0:3], [targets[8]], [np.log2(o_c)]], dtype=np.float32)
            if layer_type == "linear":
                o_l = targets[0] * targets[1]
                return np.concatenate(
                    [targets[0:2], [np.log2(o_l)]], dtype=np.float32)
        return np.float32(np.log2(targets[label]) - 6)
    return targets


if __name__ == "__main__":
    key = jax.random.PRNGKey(0)
    # Deterministic small "layer hyperparameter" vector, length 9, all positive.
    targets = jax.random.randint(key, (9,), 1, 65).astype(jnp.float32)
    # Make entry 3 a realistic odd kernel size (exercises the `== 3` branch).
    targets = targets.at[3].set(7.0)

    cases = [
        ("kernel_size", 3, "conv2d", False),
        ("stride", 4, "conv2d", False),
        ("out_channels", 1, "conv2d", False),
        ("out_channels", 1, "conv2d", True),
        ("out_channels", 1, "linear", True),
    ]

    tgt_np = np.asarray(targets)
    for mode, label, layer_type, reg in cases:
        mod = ToTargets(mode, label, layer_type, regression=reg)
        out = jax.block_until_ready(mod(targets))
        ref = _ref(mode, label, layer_type, reg, tgt_np)
        np.testing.assert_allclose(np.asarray(out), ref, rtol=1e-5, atol=1e-5)

    print("KERNEL_OK")
</pallas_src>

<mosaic_0001>
module attributes {stable_mosaic.version = 11 : i64} {
  func.func @_scalar_mode_kernel(%arg0: memref<9xf32, #tpu.memory_space<smem>>, %arg1: memref<1xf32, #tpu.memory_space<smem>>) attributes {dimension_semantics = [], scalar_prefetch = 0 : i64, scratch_operands = 0 : i64, tpu.core_type = #tpu.core_type<tc>} {
    %c3 = arith.constant 3 : index
    %0 = memref.load %arg0[%c3] : memref<9xf32, #tpu.memory_space<smem>>
    %cst = arith.constant 1.000000e+00 : f32
    %1 = arith.subf %0, %cst : f32
    %cst_0 = arith.constant 5.000000e-01 : f32
    %2 = arith.mulf %1, %cst_0 : f32
    %cst_1 = arith.constant 3.000000e+00 : f32
    %3 = arith.cmpf oeq, %2, %cst_1 : f32
    %cst_2 = arith.constant 1.000000e+00 : f32
    %4 = arith.subf %2, %cst_2 : f32
    %5 = arith.select %3, %4, %2 : f32
    %c0 = arith.constant 0 : index
    %6 = memref.load %arg1[%c0] : memref<1xf32, #tpu.memory_space<smem>>
    memref.store %5, %arg1[%c0] : memref<1xf32, #tpu.memory_space<smem>>
    return
  }
}

</mosaic_0001>

<llo_original>
// kernel: tpu_custom_call.1
$region0: #{tpu_custom_call.1}
  #allocation0 [shape = 'u32[]', space=smem, size = 0x4, offset = 0x4, fixed_abs, tag = 'smem constant byte address 0x4 - core index']
  #allocation1 [shape = 'u32[144,128]{1,0:T(1,128)}', space=vmem, size = 0x12000, scoped, tag = 'internal scratch']
  %s0 = inlined_call_operand.hbm [shape: f32[9], index: 0, kind: input, shape index: {}]
  %s1 = inlined_call_operand.hbm [shape: f32[1], index: 1, kind: output, shape index: {}]
  %s2 = sld [smem:[#allocation0]]
  $region18: #{tpu_custom_call.1} parent=0
    _
  %s4 = ssub.s32 1, %s2
  %s5 = scalar_select 0, %s4, %s2
  $region1: #{tpu_custom_call.1} parent=0
    #allocation2 [shape = 'u8[512]{0}', space=smem, size = 0x200, scoped, tag = 'input window, operand 0, single buffered']
    #allocation3 [shape = 's32[1]{0}', space=sflag, size = 0x4, scoped, tag = 'scoped memory for tpu_custom_call.1']
    #allocation4 [shape = 's32[1]{0}', space=sflag, size = 0x4, scoped, tag = 'scoped memory for tpu_custom_call.1']
    #allocation5 [shape = 'u8[512]{0}', space=smem, size = 0x200, scoped, tag = 'output window, operand 0, single buffered']
    %6 = vsyncpa [#allocation3], 0
    %7 = vsyncpa [#allocation4], 0
    // Predicated region
    $region2: #{tpu_custom_call.1} parent=1 // pred_check
      _
    $region3: #{tpu_custom_call.1} parent=1 // pred_check_branch
      %9 = sbr.rel (0) target = $region5
    $region4: #{tpu_custom_call.1} parent=1 // pred_region
      %s11 = ssub.s32 16, 16
      %12 = vsyncadd [#allocation3], %s11
      %15 = dma.hbm_to_smem %s0, 16, [#allocation2], [#allocation3]
    $region5: #{tpu_custom_call.1} parent=1 // pred_fallthru
      _
    // Predicated region
    $region6: #{tpu_custom_call.1} parent=1 // pred_check
      _
    $region7: #{tpu_custom_call.1} parent=1 // pred_check_branch
      %17 = sbr.rel (0) target = $region9
    $region8: #{tpu_custom_call.1} parent=1 // pred_region
      %18 = dma.done [#allocation3], 16
    $region9: #{tpu_custom_call.1} parent=1 // pred_fallthru
      _
    %19 = sfence
    %s20 = sld [smem:[#allocation2 + $0x3]]
    %s21 = ssub.f32 %s20, 1.0
    %s22 = smul.f32 %s21, 0.5
    %p23 = scmp.eq.f32.partialorder %s22, 3.0
    %s24 = ssub.f32 %s22, 1.0
    %s25 = scalar_select %p23, %s24, %s22
    %s26 = scalar_lea.smem [#allocation5], 0
    %27 = sst [smem:[%s26]] %s25
    // Predicated region
    $region10: #{tpu_custom_call.1} parent=1 // pred_check
      _
    $region11: #{tpu_custom_call.1} parent=1 // pred_check_branch
      %29 = sbr.rel (0) target = $region13
    $region12: #{tpu_custom_call.1} parent=1 // pred_region
      %s31 = ssub.s32 16, 16
      %32 = vsyncadd [#allocation4], %s31
      %35 = dma.smem_to_hbm [#allocation5], 16, %s1, [#allocation4]
    $region13: #{tpu_custom_call.1} parent=1 // pred_fallthru
      _
    // Predicated region
    $region14: #{tpu_custom_call.1} parent=1 // pred_check
      _
    $region15: #{tpu_custom_call.1} parent=1 // pred_check_branch
      %37 = sbr.rel (0) target = $region17
    $region16: #{tpu_custom_call.1} parent=1 // pred_region
      %38 = dma.done [#allocation4], 16
    $region17: #{tpu_custom_call.1} parent=1 // pred_fallthru
      _
    %39 = sfence
    %40 = vsyncpa [#allocation3], 1
    %41 = vsyncpa [#allocation4], 1

</llo_original>
